<compile_context>
chip_gen: v5e
topology: v5e:2x2
jax: 0.10.0
libtpu: 0.0.40
codegen_flags: <defaults>
</compile_context>

<pallas_src>
import functools

import jax
import jax.numpy as jnp
from jax.experimental import pallas as pl
from jax.experimental.pallas import tpu as pltpu


# ---------------------------------------------------------------------------
# Kernels
# ---------------------------------------------------------------------------
def _pool_partials_kernel(x_ref, part_ref, *, hw, thw, kpp, need_mask):
    """Accumulate f32 sums over HW tiles directly into the resident output block.

    x_ref:    (tb, C, thw)  streamed input tile
    part_ref: (1, tb, C)    f32 output block, resident across the (arbitrary) k axis
    """
    k = pl.program_id(2)

    @pl.when(k == 0)
    def _():
        part_ref[...] = jnp.zeros_like(part_ref)

    xs = x_ref[...].astype(jnp.float32)
    if need_mask:
        # Global HW-block index covered by this step (may point past the end on the
        # ragged tail of the P split or the last partial HW block): zero it out.
        kb = pl.program_id(1) * kpp + k
        lane = jax.lax.broadcasted_iota(jnp.int32, xs.shape, 2)
        xs = jnp.where(kb * thw + lane < hw, xs, 0.0)

    # XLU cross-lane reduce per step; fully hidden under the HBM read for these tiles.
    part_ref[...] += jnp.sum(xs, axis=-1)[None]


def _gate_mlp_kernel(part_ref, w1_ref, b1_ref, w2_ref, b2_ref, g_ref, *, inv_hw):
    """Combine partial sums -> mean, then the 2-layer MLP in f32 (whole arrays in VMEM)."""
    pooled = jnp.sum(part_ref[...], axis=0) * inv_hw                       # (B, C)
    h = jnp.dot(pooled, w1_ref[...].astype(jnp.float32),
                preferred_element_type=jnp.float32) + b1_ref[...]
    h = jnp.maximum(h, 0.0)                                                # ReLU
    g_ref[...] = jnp.dot(h, w2_ref[...].astype(jnp.float32),
                         preferred_element_type=jnp.float32) + b2_ref[...]


def _broadcast_kernel(g_ref, o_ref):
    """Write-only expand_as: (tb, C) gate -> (tb, C, thw) output slab."""
    o_ref[...] = jnp.broadcast_to(g_ref[...][:, :, None], o_ref.shape).astype(o_ref.dtype)


# ---------------------------------------------------------------------------
# Tile selection (no divisibility required; grids use cdiv + masking)
# ---------------------------------------------------------------------------
def _choose_tiles(b, c, hw, itemsize, budget):
    """Pick (batch_tile, hw_tile) so one (tb, C, thw) block is ~`budget` bytes.

    Honours:
      * (tb, C) gate/partials blocks need tb % 8 == 0 or tb == B (sublane rule);
      * lane tiles are the full HW (preferred: full-dim blocks are always legal and
        maximally dense) or a multiple of 128 (unmasked lane-dense stores).
    """
    tb_min = b if b < 8 else 8
    lane_cap = max(1, budget // max(1, tb_min * c * itemsize))
    if lane_cap >= hw:
        thw = hw
    elif lane_cap >= 128:
        thw = (lane_cap // 128) * 128
    else:
        thw = lane_cap                      # extreme-VMEM corner: lane-sparse but safe

    cap = max(1, budget // max(1, c * thw * itemsize))
    if cap >= b:
        tb = b
    elif cap >= 8:
        tb = (cap // 8) * 8
    else:
        tb = tb_min
    return tb, thw


# ---------------------------------------------------------------------------
# Wrapper
# ---------------------------------------------------------------------------
def channel_gate_no_norm(x, w1, b1, w2, b2, *,
                         pool_tile_bytes=8 << 20, bcast_tile_bytes=8 << 20):
    """x: (B, C, H, W) NCHW.  w1: (C, Ch), b1: (Ch,), w2: (Ch, C), b2: (C,).

    Weights are stored transposed relative to torch.nn.Linear.weight (y = x @ w + b).
    Returns the channel gate broadcast over the spatial dims, same shape/dtype as x.
    """
    B, C, H, W = x.shape
    assert H == W, "avg_pool2d(kernel=stride=H) + Flatten matches Linear(C) only for H == W"
    HW = H * W
    Ch = w1.shape[1]

    x3 = x.reshape(B, C, HW)
    b1_2d = b1.reshape(1, Ch).astype(jnp.float32)
    b2_2d = b2.reshape(1, C).astype(jnp.float32)
    itemsize = jnp.dtype(x.dtype).itemsize

    # -------- Pass 1: tiled global-sum partials -> (P, B, C) f32 -----------------------
    tb1, thw1 = _choose_tiles(B, C, HW, itemsize, pool_tile_bytes)
    num_b1 = pl.cdiv(B, tb1)
    num_k = pl.cdiv(HW, thw1)
    # Guarantee a parallel grid axis with extent >= 2 for megacore (v7x) even when the
    # batch axis collapses to a single block.
    P = 2 if (num_b1 == 1 and num_k >= 2) else 1
    kpp = pl.cdiv(num_k, P)
    need_mask = (HW % thw1 != 0) or (P * kpp != num_k)

    def x_index_map(i, p, k):
        # Clamp the ragged tail of the P split; the in-kernel mask zeroes its contribution.
        return (i, 0, jnp.minimum(p * kpp + k, num_k - 1))

    partials = pl.pallas_call(
        functools.partial(_pool_partials_kernel,
                          hw=HW, thw=thw1, kpp=kpp, need_mask=need_mask),
        out_shape=jax.ShapeDtypeStruct((P, B, C), jnp.float32),
        grid=(num_b1, P, kpp),
        in_specs=[pl.BlockSpec((tb1, C, thw1), x_index_map)],
        out_specs=pl.BlockSpec((1, tb1, C), lambda i, p, k: (p, i, 0)),
        compiler_params=pltpu.CompilerParams(
            dimension_semantics=("parallel", "parallel", "arbitrary"),
            vmem_limit_bytes=32 << 20),
        cost_estimate=pl.CostEstimate(
            flops=B * C * HW, transcendentals=0,
            bytes_accessed=B * C * HW * itemsize + P * B * C * 4),
    )(x3)

    # -------- Pass 2: tiny gate MLP  (P, B, C) -> (B, C) f32 ---------------------------
    gate = pl.pallas_call(
        functools.partial(_gate_mlp_kernel, inv_hw=1.0 / HW),
        out_shape=jax.ShapeDtypeStruct((B, C), jnp.float32),
    )(partials, w1, b1_2d, w2, b2_2d)

    # -------- Pass 3: lane-dense broadcast write (never re-reads x) --------------------
    tb3, thw3 = _choose_tiles(B, C, HW, itemsize, bcast_tile_bytes)
    num_b3 = pl.cdiv(B, tb3)
    num_j = pl.cdiv(HW, thw3)
    # TODO(synk): for HW % 128 != 0 (49/196/784) with very large C*HW, fold channel
    # groups into the lane axis ((B, C/g, g*HW) view) to avoid per-row masked stores.
    out3 = pl.pallas_call(
        _broadcast_kernel,
        out_shape=jax.ShapeDtypeStruct((B, C, HW), x.dtype),
        grid=(num_b3, num_j),
        in_specs=[pl.BlockSpec((tb3, C), lambda i, j: (i, 0))],
        out_specs=pl.BlockSpec((tb3, C, thw3), lambda i, j: (i, 0, j)),
        compiler_params=pltpu.CompilerParams(
            dimension_semantics=("parallel", "parallel"),
            vmem_limit_bytes=32 << 20),
        cost_estimate=pl.CostEstimate(
            flops=0, transcendentals=0,
            bytes_accessed=B * C * HW * itemsize + B * C * 4),
    )(gate)

    return out3.reshape(B, C, H, W)


# ---------------------------------------------------------------------------
# Reference + self-test
# ---------------------------------------------------------------------------
def reference(x, w1, b1, w2, b2):
    pooled = jnp.mean(x.astype(jnp.float32), axis=(2, 3))           # (B, C)
    h = jnp.maximum(pooled @ w1 + b1, 0.0)
    g = h @ w2 + b2
    return jnp.broadcast_to(g[:, :, None, None], x.shape).astype(x.dtype)


if __name__ == "__main__":
    # Module config: gate_channel=32, reduction_ratio=16, num_layers=1 -> hidden = 2.
    B, C, H, W = 2, 32, 16, 16
    r = 16
    Ch = C // r

    key = jax.random.PRNGKey(0)
    kx, kw1, kb1, kw2, kb2 = jax.random.split(key, 5)

    x = jax.random.normal(kx, (B, C, H, W), dtype=jnp.float32)

    # Deterministic parameter init (uniform, roughly matching nn.Linear default scale).
    bound1 = 1.0 / (C ** 0.5)
    bound2 = 1.0 / (Ch ** 0.5)
    w1 = jax.random.uniform(kw1, (C, Ch), jnp.float32, -bound1, bound1)   # Linear(C -> Ch), transposed
    b1 = jax.random.uniform(kb1, (Ch,), jnp.float32, -bound1, bound1)
    w2 = jax.random.uniform(kw2, (Ch, C), jnp.float32, -bound2, bound2)   # Linear(Ch -> C), transposed
    b2 = jax.random.uniform(kb2, (C,), jnp.float32, -bound2, bound2)

    out = jax.block_until_ready(channel_gate_no_norm(x, w1, b1, w2, b2))
    ref = jax.block_until_ready(reference(x, w1, b1, w2, b2))

    assert out.shape == x.shape and out.dtype == x.dtype
    assert jnp.allclose(out, ref, atol=1e-5, rtol=1e-5), "mismatch vs reference"

    print("KERNEL_OK")
</pallas_src>

<mosaic_0001>
module attributes {stable_mosaic.version = 11 : i64} {
  func.func @_pool_partials_kernel(%arg0: i32, %arg1: i32, %arg2: i32, %arg3: memref<2x32x256xf32, #tpu.memory_space<vmem>>, %arg4: memref<1x2x32xf32, #tpu.memory_space<vmem>>) attributes {dimension_semantics = [#tpu.dimension_semantics<parallel>, #tpu.dimension_semantics<parallel>, #tpu.dimension_semantics<arbitrary>], iteration_bounds = array<i64: 1, 1, 1>, scalar_prefetch = 0 : i64, scratch_operands = 0 : i64, tpu.core_type = #tpu.core_type<tc>, window_params = [{transform_indices = @transform_0, window_bounds = array<i64: 2, 32, 256>}, {transform_indices = @transform_1, window_bounds = array<i64: 1, 2, 32>}]} {
    %c0_i32 = arith.constant 0 : i32
    %0 = arith.cmpi eq, %arg2, %c0_i32 : i32
    %1 = arith.extui %0 : i1 to i32
    %c0_i32_0 = arith.constant 0 : i32
    %2 = arith.cmpi ne, %1, %c0_i32_0 : i32
    scf.if %2 {
      %cst_9 = arith.constant 0.000000e+00 : f32
      %9 = vector.broadcast %cst_9 : f32 to vector<1x2x32xf32>
      %c0_10 = arith.constant 0 : index
      %c0_11 = arith.constant 0 : index
      %c0_12 = arith.constant 0 : index
      %10 = vector.load %arg4[%c0_10, %c0_11, %c0_12] : memref<1x2x32xf32, #tpu.memory_space<vmem>>, vector<1x2x32xf32>
      tpu.vector_store %arg4[%c0_10, %c0_11, %c0_12], %9 {strides = array<i32>} : memref<1x2x32xf32, #tpu.memory_space<vmem>>, vector<1x2x32xf32>,
    } else {
    }
    %c0 = arith.constant 0 : index
    %c0_1 = arith.constant 0 : index
    %c0_2 = arith.constant 0 : index
    %3 = vector.load %arg3[%c0, %c0_1, %c0_2] : memref<2x32x256xf32, #tpu.memory_space<vmem>>, vector<2x32x256xf32>
    %c0_3 = arith.constant 0 : index
    %c0_4 = arith.constant 0 : index
    %c0_5 = arith.constant 0 : index
    %4 = vector.load %arg4[%c0_3, %c0_4, %c0_5] : memref<1x2x32xf32, #tpu.memory_space<vmem>>, vector<1x2x32xf32>
    %cst = arith.constant dense<0.000000e+00> : vector<2x32xf32>
    %5 = vector.multi_reduction <add>, %3, %cst [2] : vector<2x32x256xf32> to vector<2x32xf32>
    %6 = vector.shape_cast %5 : vector<2x32xf32> to vector<1x2x32xf32>
    %7 = arith.addf %4, %6 : vector<1x2x32xf32>
    %c0_6 = arith.constant 0 : index
    %c0_7 = arith.constant 0 : index
    %c0_8 = arith.constant 0 : index
    %8 = vector.load %arg4[%c0_6, %c0_7, %c0_8] : memref<1x2x32xf32, #tpu.memory_space<vmem>>, vector<1x2x32xf32>
    tpu.vector_store %arg4[%c0_6, %c0_7, %c0_8], %7 {strides = array<i32>} : memref<1x2x32xf32, #tpu.memory_space<vmem>>, vector<1x2x32xf32>,
    return
  }
  func.func @transform_0(%arg0: i32, %arg1: i32, %arg2: i32) -> (i32, i32, i32) {
    %c1_i32 = arith.constant 1 : i32
    %0 = arith.muli %arg1, %c1_i32 : i32
    %1 = arith.addi %0, %arg2 : i32
    %c0_i32 = arith.constant 0 : i32
    %2 = arith.minsi %1, %c0_i32 : i32
    %c0_i32_0 = arith.constant 0 : i32
    %c0_i32_1 = arith.constant 0 : i32
    return %arg0, %c0_i32_0, %2 : i32, i32, i32
  }
  func.func @transform_1(%arg0: i32, %arg1: i32, %arg2: i32) -> (i32, i32, i32) {
    %c0_i32 = arith.constant 0 : i32
    %c0_i32_0 = arith.constant 0 : i32
    return %arg1, %arg0, %c0_i32 : i32, i32, i32
  }
}

</mosaic_0001>

<llo_original>
// kernel: tpu_custom_call.1
$region0: #{tpu_custom_call.1}
  #allocation0 [shape = 'u32[]', space=smem, size = 0x4, offset = 0x4, fixed_abs, tag = 'smem constant byte address 0x4 - core index']
  #allocation1 [shape = 'u32[72,128]{1,0:T(1,128)}', space=vmem, size = 0x9000, scoped, tag = 'internal scratch']
  %s0 = inlined_call_operand.hbm [shape: f32[2,32,256], index: 0, kind: input, shape index: {}]
  %s1 = inlined_call_operand.hbm [shape: f32[1,2,32], index: 1, kind: output, shape index: {}]
  %s2 = sld [smem:[#allocation0]]
  $region22: #{tpu_custom_call.1} parent=0
    _
  %s4 = ssub.s32 1, %s2
  %s5 = scalar_select 0, %s4, %s2
  $region1: #{tpu_custom_call.1} parent=0
    #allocation2 [shape = 'u8[65536]{0}', space=vmem, size = 0x10000, scoped, tag = 'input window, operand 0, single buffered']
    #allocation3 [shape = 's32[1]{0}', space=sflag, size = 0x4, scoped, tag = 'scoped memory for tpu_custom_call.1']
    #allocation4 [shape = 's32[1]{0}', space=sflag, size = 0x4, scoped, tag = 'scoped memory for tpu_custom_call.1']
    #allocation5 [shape = 'u8[1024]{0}', space=vmem, size = 0x400, scoped, tag = 'output window, operand 0, single buffered']
    %6 = vsyncpa [#allocation3], 0
    %7 = vsyncpa [#allocation4], 0
    // Predicated region
    $region2: #{tpu_custom_call.1} parent=1 // pred_check
      _
    $region3: #{tpu_custom_call.1} parent=1 // pred_check_branch
      %9 = sbr.rel (0) target = $region5
    $region4: #{tpu_custom_call.1} parent=1 // pred_region
      %s10 = sadd.s32 0, 0
      %p11 = scmp.lt.s32.totalorder %s10, 0
      %s12 = scalar_select %p11, %s10, 0
      %s13 = smul.u32 2, %s12
      %15 = vsyncadd [#allocation3], 0
      %s16 = smul.addr %s13, 8
      %s17 = scalar_lea.hbm %s0, %s16
      %s18 = sshll.u32 %s17, 4
      %s19 = int_to_ptr.hbm [resolvable:$true] %s18
      %s20 = sshll.u32 [#allocation2], 4
      %s21 = int_to_ptr.vmem [resolvable:$true] %s20
      %26 = dma.hbm_to_vmem [thread:$0]  %s19, 2048, %s21, [#allocation3], 256, 256, 16
    $region5: #{tpu_custom_call.1} parent=1 // pred_fallthru
      _
    // Predicated region
    $region6: #{tpu_custom_call.1} parent=1 // pred_check
      _
    $region7: #{tpu_custom_call.1} parent=1 // pred_check_branch
      %28 = sbr.rel (0) target = $region9
    $region8: #{tpu_custom_call.1} parent=1 // pred_region
      %30 = dma.done [#allocation3], 2048
    $region9: #{tpu_custom_call.1} parent=1 // pred_fallthru
      _
    %s31 = sadd.s32 0, 0
    %p32 = scmp.lt.s32.totalorder %s31, 0
    %s33 = scalar_select %p32, %s31, 0
    %s34 = smul.u32 2, %s33
    %p35 = scmp.eq.s32.totalorder 0, 0
    // Predicated region
    $region10: #{tpu_custom_call.1} parent=1 // pred_check
      %p36 = pneg %p35
    $region11: #{tpu_custom_call.1} parent=1 // pred_check_branch
      %38 = sbr.rel (%p36) target = $region13
    $region12: #{tpu_custom_call.1} parent=1 // pred_region
      %vm39 = vcmask 254976
      %40 = vst.msk [vmem:[#allocation5] sm:$0x3] %vm39, 0.0
    $region13: #{tpu_custom_call.1} parent=1 // pred_fallthru
      _
    %v41 = vld [vmem:[#allocation2] sm:$0xff]
    %v42 = vld [vmem:[#allocation2 + $0x8] sm:$0xff]
    %v43 = vld [vmem:[#allocation2 + $0x10] sm:$0xff]
    %v44 = vld [vmem:[#allocation2 + $0x18] sm:$0xff]
    %v45 = vld [vmem:[#allocation2 + $0x20] sm:$0xff]
    %v46 = vld [vmem:[#allocation2 + $0x28] sm:$0xff]
    %v47 = vld [vmem:[#allocation2 + $0x30] sm:$0xff]
    %v48 = vld [vmem:[#allocation2 + $0x38] sm:$0xff]
    %v49 = vld [vmem:[#allocation2 + $0x40] sm:$0xff]
    %v50 = vld [vmem:[#allocation2 + $0x48] sm:$0xff]
    %v51 = vld [vmem:[#allocation2 + $0x50] sm:$0xff]
    %v52 = vld [vmem:[#allocation2 + $0x58] sm:$0xff]
    %v53 = vld [vmem:[#allocation2 + $0x60] sm:$0xff]
    %v54 = vld [vmem:[#allocation2 + $0x68] sm:$0xff]
    %v55 = vld [vmem:[#allocation2 + $0x70] sm:$0xff]
    %v56 = vld [vmem:[#allocation2 + $0x78] sm:$0xff]
    %v57 = vld [vmem:[#allocation5] sm:$0x3]
    %v58 = vadd.f32 %v41, %v42
    %59 = vadd.xlane.f32.xlu0 %v58
    %v60 = vpop.xlane.xlu0 %59
    %v61 = vadd.f32 %v43, %v44
    %62 = vadd.xlane.f32.xlu0 %v61
    %v63 = vpop.xlane.xlu0 %62
    %v64 = vadd.f32 %v45, %v46
    %65 = vadd.xlane.f32.xlu0 %v64
    %v66 = vpop.xlane.xlu0 %65
    %v67 = vadd.f32 %v47, %v48
    %68 = vadd.xlane.f32.xlu0 %v67
    %v69 = vpop.xlane.xlu0 %68
    %v70 = vadd.f32 %v49, %v50
    %71 = vadd.xlane.f32.xlu0 %v70
    %v72 = vpop.xlane.xlu0 %71
    %v73 = vadd.f32 %v51, %v52
    %74 = vadd.xlane.f32.xlu0 %v73
    %v75 = vpop.xlane.xlu0 %74
    %v76 = vadd.f32 %v53, %v54
    %77 = vadd.xlane.f32.xlu0 %v76
    %v78 = vpop.xlane.xlu0 %77
    %v79 = vadd.f32 %v55, %v56
    %80 = vadd.xlane.f32.xlu0 %v79
    %v81 = vpop.xlane.xlu0 %80
    %v90 = vlaneseq
    %v91 = vand.u32 %v90, 127
    %v92 = vperm.slane %v60, %v91
    %v93 = vadd.s32 %v91, 4294967288
    %v94 = vperm.slane %v63, %v93
    %vm95 = vcmask 130112
    %v96 = vsel %vm95, %v94, %v92
    %v97 = vadd.s32 %v91, 4294967280
    %v98 = vperm.slane %v66, %v97
    %vm99 = vcmask 195712
    %v100 = vsel %vm99, %v98, %v96
    %v101 = vadd.s32 %v91, 4294967272
    %v102 = vperm.slane %v69, %v101
    %vm103 = vcmask 261312
    %v104 = vsel %vm103, %v102, %v100
    %v105 = vperm.slane %v72, %v91
    %v106 = vperm.slane %v75, %v93
    %v107 = vsel %vm95, %v106, %v105
    %v108 = vperm.slane %v78, %v97
    %v109 = vsel %vm99, %v108, %v107
    %v110 = vperm.slane %v81, %v101
    %v111 = vsel %vm103, %v110, %v109
    %vm112 = vcmask 1041409
    %v113 = vsel %vm112, %v111, %v104
    %v115 = vadd.f32 %v57, %v113
    %vm116 = vcmask 254976
    %117 = vst.msk [vmem:[#allocation5] sm:$0x3] %vm116, %v115
    // Predicated region
    $region14: #{tpu_custom_call.1} parent=1 // pred_check
      _
    $region15: #{tpu_custom_call.1} parent=1 // pred_check_branch
      %119 = sbr.rel (0) target = $region17
    $region16: #{tpu_custom_call.1} parent=1 // pred_region
      %121 = vsyncadd [#allocation4], 0
      %s123 = sshll.u32 [#allocation5], 4
      %s124 = int_to_ptr.vmem [resolvable:$true] %s123
      %s125 = sshll.u32 %s1, 4
      %s126 = int_to_ptr.hbm [resolvable:$true] %s125
      %128 = dma.vmem_to_hbm [thread:$0]  %s124, 32, %s126, [#allocation4]
    $region17: #{tpu_custom_call.1} parent=1 // pred_fallthru
      _
    // Predicated region
    $region18: #{tpu_custom_call.1} parent=1 // pred_check
      _
    $region19: #{tpu_custom_call.1} parent=1 // pred_check_branch
      %130 = sbr.rel (0) target = $region21
    $region20: #{tpu_custom_call.1} parent=1 // pred_region
      %132 = dma.done [#allocation4], 32
    $region21: #{tpu_custom_call.1} parent=1 // pred_fallthru
      _
    %133 = vsyncpa [#allocation3], 1
    %134 = vsyncpa [#allocation4], 1

</llo_original>
